<compile_context>
chip_gen: v7x
topology: tpu7x:2x2x1
jax: 0.10.0
libtpu: 0.0.40
codegen_flags: <defaults>
</compile_context>

<pallas_src>
import functools
import math

import jax
import jax.numpy as jnp
from jax import lax
from jax.experimental import pallas as pl
from jax.experimental.pallas import tpu as pltpu


# ----------------------------------------------------------------------------
# helpers
# ----------------------------------------------------------------------------
def _round_up(x, m):
    return ((x + m - 1) // m) * m


_GATE_PERM = (0, 1, 3, 2)   # PyTorch gate order [i, f, g, o] -> kernel order [i, f, o, g]


def _pack_gates(w, H, Hp):
    """(..., 4*H) -> (..., 4*Hp): reorder gates to [i, f, o, g], zero-pad each to Hp lanes."""
    lead = w.shape[:-1]
    w4 = w.reshape(lead + (4, H))[..., jnp.array(_GATE_PERM), :]
    w4 = jnp.pad(w4, [(0, 0)] * len(lead) + [(0, 0), (0, Hp - H)])
    return w4.reshape(lead + (4 * Hp,))


def _vmem_limit(need_bytes):
    # >= default scoped limit everywhere, <= 50 MiB so it stays under v7x's 64 MiB physical.
    return int(min(max(int(need_bytes) + (4 << 20), 32 << 20), 50 << 20))


def _choose_time_chunk(T, B, Hp, budget_bytes=20 << 20):
    """Timesteps per recurrence grid step.  Whole T for short sequences; else <=128,
    sized so the double-buffered bf16 xp/out blocks fit a conservative VMEM budget."""
    if T <= 128:
        return T
    per_t = 2 * (2 * B * 4 * Hp * 2 + 2 * B * Hp * 2)   # double-buffered bf16 blocks / step
    tc = min(128, max(8, budget_bytes // per_t))
    return int(max(8, (tc // 8) * 8))


# ----------------------------------------------------------------------------
# Pallas kernel 1: batched linear (x @ w + b), grid = (G, row_chunks).
# Used for the hoisted layer-0 LSTM input projection (both directions at once).
# ----------------------------------------------------------------------------
def _linear_kernel(x_ref, w_ref, b_ref, o_ref):
    o_ref[...] = (
        jnp.dot(x_ref[...], w_ref[...], preferred_element_type=jnp.float32)
        + b_ref[...]
    ).astype(o_ref.dtype)


def _batched_linear_pallas(x, w, b, *, out_dtype=jnp.bfloat16, row_tile=512):
    """x: (R, K) bf16; w: (G, K, N) bf16; b: (G, 1, N) f32 -> (G, R, N) out_dtype."""
    R, K = x.shape
    G, _, N = w.shape
    tm = min(row_tile, _round_up(R, 8))
    Rp = _round_up(R, tm)
    if Rp != R:
        x = jnp.pad(x, ((0, Rp - R), (0, 0)))
    need = 2 * (tm * K * 2 + K * N * 2 + N * 4 + tm * N * jnp.dtype(out_dtype).itemsize)
    out = pl.pallas_call(
        _linear_kernel,
        out_shape=jax.ShapeDtypeStruct((G, Rp, N), out_dtype),
        grid_spec=pltpu.PrefetchScalarGridSpec(
            num_scalar_prefetch=0,
            grid=(G, Rp // tm),
            in_specs=[
                pl.BlockSpec((tm, K), lambda g, r: (r, 0)),
                pl.BlockSpec((None, K, N), lambda g, r: (g, 0, 0)),
                pl.BlockSpec((None, 1, N), lambda g, r: (g, 0, 0)),
            ],
            out_specs=pl.BlockSpec((None, tm, N), lambda g, r: (g, r, 0)),
        ),
        compiler_params=pltpu.CompilerParams(
            dimension_semantics=("parallel", "parallel"),
            vmem_limit_bytes=_vmem_limit(need)),
    )(x, w, b)
    return out[:, :R, :] if Rp != R else out


# ----------------------------------------------------------------------------
# Pallas kernel 2: dual-input linear (xa @ wa + xb @ wb + b).
# Consumes the padded (…, Hp) fwd/bwd hidden slabs directly (no :H slice / concat),
# used for the fc_readmit head and for layer>0 input projections.
# ----------------------------------------------------------------------------
def _dual_linear_kernel(xa_ref, xb_ref, wa_ref, wb_ref, b_ref, o_ref):
    acc = jnp.dot(xa_ref[...], wa_ref[...], preferred_element_type=jnp.float32)
    acc = acc + jnp.dot(xb_ref[...], wb_ref[...], preferred_element_type=jnp.float32)
    o_ref[...] = (acc + b_ref[...]).astype(o_ref.dtype)


def _dual_linear_pallas(xa, xb, wa, wb, b, *, out_dtype=jnp.bfloat16, row_tile=512):
    """xa: (R, Ka), xb: (R, Kb) bf16; wa: (G, Ka, N), wb: (G, Kb, N) bf16; b: (G,1,N) f32."""
    R, Ka = xa.shape
    _, Kb = xb.shape
    G, _, N = wa.shape
    tm = min(row_tile, _round_up(R, 8))
    Rp = _round_up(R, tm)
    if Rp != R:
        xa = jnp.pad(xa, ((0, Rp - R), (0, 0)))
        xb = jnp.pad(xb, ((0, Rp - R), (0, 0)))
    need = 2 * (tm * (Ka + Kb) * 2 + (Ka + Kb) * N * 2 + N * 4
                + tm * N * jnp.dtype(out_dtype).itemsize)
    out = pl.pallas_call(
        _dual_linear_kernel,
        out_shape=jax.ShapeDtypeStruct((G, Rp, N), out_dtype),
        grid_spec=pltpu.PrefetchScalarGridSpec(
            num_scalar_prefetch=0,
            grid=(G, Rp // tm),
            in_specs=[
                pl.BlockSpec((tm, Ka), lambda g, r: (r, 0)),
                pl.BlockSpec((tm, Kb), lambda g, r: (r, 0)),
                pl.BlockSpec((None, Ka, N), lambda g, r: (g, 0, 0)),
                pl.BlockSpec((None, Kb, N), lambda g, r: (g, 0, 0)),
                pl.BlockSpec((None, 1, N), lambda g, r: (g, 0, 0)),
            ],
            out_specs=pl.BlockSpec((None, tm, N), lambda g, r: (g, r, 0)),
        ),
        compiler_params=pltpu.CompilerParams(
            dimension_semantics=("parallel", "parallel"),
            vmem_limit_bytes=_vmem_limit(need)),
    )(xa, xb, wa, wb, b)
    return out[:, :R, :] if Rp != R else out


# ----------------------------------------------------------------------------
# Pallas kernel 3: fused bidirectional LSTM recurrence over pre-projected inputs.
# grid = (T_pad // Tc,), sequential ("arbitrary").  Both directions advance inside
# every step; h/c for each direction live in VMEM scratch across grid steps.
# Gate layout [i, f, o, g] (sigmoid gates contiguous).
# ----------------------------------------------------------------------------
def _bilstm_recurrence_kernel(xpf_ref, xpb_ref, whh_ref, of_ref, ob_ref,
                              hf, cf, hb, cb, *, Tc, Hp, unroll):
    @pl.when(pl.program_id(0) == 0)
    def _():
        hf[...] = jnp.zeros_like(hf)
        cf[...] = jnp.zeros_like(cf)
        hb[...] = jnp.zeros_like(hb)
        cb[...] = jnp.zeros_like(cb)

    def step(k, carry):
        kb = Tc - 1 - k                      # backward direction walks its chunk in reverse
        hf_p = hf[...]
        cf_p = cf[...]
        hb_p = hb[...]
        cb_p = cb[...]
        # Two independent matmuls back-to-back: the second fills the MXU pipeline
        # while the first drains (the recurrence is latency-, not throughput-bound).
        gf = xpf_ref[k].astype(jnp.float32) + jnp.dot(
            hf_p.astype(jnp.bfloat16), whh_ref[0], preferred_element_type=jnp.float32)
        gb = xpb_ref[kb].astype(jnp.float32) + jnp.dot(
            hb_p.astype(jnp.bfloat16), whh_ref[1], preferred_element_type=jnp.float32)
        # gate layout [i, f, o, g]: one wide sigmoid + one tanh per direction
        sf = jax.nn.sigmoid(gf[:, :3 * Hp])
        gf_t = jnp.tanh(gf[:, 3 * Hp:])
        sb = jax.nn.sigmoid(gb[:, :3 * Hp])
        gb_t = jnp.tanh(gb[:, 3 * Hp:])
        cf_n = sf[:, Hp:2 * Hp] * cf_p + sf[:, :Hp] * gf_t
        cb_n = sb[:, Hp:2 * Hp] * cb_p + sb[:, :Hp] * gb_t
        hf_n = sf[:, 2 * Hp:] * jnp.tanh(cf_n)
        hb_n = sb[:, 2 * Hp:] * jnp.tanh(cb_n)
        cf[...] = cf_n
        hf[...] = hf_n
        cb[...] = cb_n
        hb[...] = hb_n
        of_ref[k] = hf_n.astype(of_ref.dtype)    # lane-dense (B, Hp) stores
        ob_ref[kb] = hb_n.astype(ob_ref.dtype)
        return carry

    lax.fori_loop(0, Tc, step, 0, unroll=unroll)


def _bilstm_recurrence_pallas(xp, w_hh, *, Tc):
    """xp: (2, T_pad, B, 4*Hp) bf16; w_hh: (2, Hp, 4*Hp) bf16
       -> (fwd, bwd) each (T_pad, B, Hp) bf16."""
    _, T_pad, B, _ = xp.shape
    Hp = w_hh.shape[1]
    nc = T_pad // Tc
    unroll = min(Tc, 8)
    need = (2 * (Tc * B * 4 * Hp * 2) * 2          # xpf + xpb blocks, double-buffered
            + 2 * (Tc * B * Hp * 2) * 2            # of + ob blocks, double-buffered
            + 2 * (2 * Hp * 4 * Hp * 2)            # w_hh
            + 4 * B * Hp * 4)                      # h/c scratch
    kernel = functools.partial(_bilstm_recurrence_kernel, Tc=Tc, Hp=Hp, unroll=unroll)
    out_f, out_b = pl.pallas_call(
        kernel,
        out_shape=(jax.ShapeDtypeStruct((T_pad, B, Hp), jnp.bfloat16),
                   jax.ShapeDtypeStruct((T_pad, B, Hp), jnp.bfloat16)),
        grid_spec=pltpu.PrefetchScalarGridSpec(
            num_scalar_prefetch=0,
            grid=(nc,),
            in_specs=[
                # forward direction: time chunks in order
                pl.BlockSpec((None, Tc, B, 4 * Hp), lambda i: (0, i, 0, 0)),
                # backward direction: time chunks in reverse order (no reversed copies)
                pl.BlockSpec((None, Tc, B, 4 * Hp), lambda i: (1, nc - 1 - i, 0, 0)),
                pl.BlockSpec((2, Hp, 4 * Hp), lambda i: (0, 0, 0)),
            ],
            out_specs=[
                pl.BlockSpec((Tc, B, Hp), lambda i: (i, 0, 0)),
                pl.BlockSpec((Tc, B, Hp), lambda i: (nc - 1 - i, 0, 0)),
            ],
            scratch_shapes=[pltpu.VMEM((B, Hp), jnp.float32) for _ in range(4)],
        ),
        compiler_params=pltpu.CompilerParams(
            dimension_semantics=("arbitrary",),
            vmem_limit_bytes=_vmem_limit(need)),
    )(xp, xp, w_hh)
    return out_f, out_b


# ----------------------------------------------------------------------------
# Text model: bidirectional LSTM encoder (the `text_model` used by Text_Only_DS).
# Returns the padded per-direction hidden slabs (padded lanes are exactly zero).
# ----------------------------------------------------------------------------
class BiLSTMTextModel:
    name = "lstm"

    def __init__(self, input_dim, hidden_size, num_layers=1, key=None):
        self.input_dim = input_dim
        self.hidden_size = hidden_size
        self.num_layers = num_layers
        self.Hp = max(128, _round_up(hidden_size, 128))   # lane-aligned hidden size
        if key is None:
            key = jax.random.PRNGKey(0)
        stdv = 1.0 / math.sqrt(hidden_size)
        H, Hp = hidden_size, self.Hp
        self.params = []       # padded / bf16 params consumed by the Pallas kernels
        self.raw_params = []   # unpadded f32 params (PyTorch layout; used by reference)
        for layer in range(num_layers):
            in_dim = input_dim if layer == 0 else 2 * hidden_size
            raw_dirs, wih_dirs, wih_f_dirs, wih_b_dirs, whh_dirs, b_dirs = [], [], [], [], [], []
            for _ in range(2):                             # forward, backward
                key, k1, k2, k3, k4 = jax.random.split(key, 5)
                w_ih = jax.random.uniform(k1, (in_dim, 4 * H), jnp.float32, -stdv, stdv)
                w_hh = jax.random.uniform(k2, (H, 4 * H), jnp.float32, -stdv, stdv)
                b_ih = jax.random.uniform(k3, (4 * H,), jnp.float32, -stdv, stdv)
                b_hh = jax.random.uniform(k4, (4 * H,), jnp.float32, -stdv, stdv)
                b = (b_ih + b_hh).reshape(1, 4 * H)
                raw_dirs.append((w_ih, w_hh, b))
                whh_p = _pack_gates(jnp.pad(w_hh, ((0, Hp - H), (0, 0))), H, Hp)
                whh_dirs.append(whh_p.astype(jnp.bfloat16))
                b_dirs.append(_pack_gates(b, H, Hp))                      # f32 (1, 4*Hp)
                if layer == 0:
                    wih_dirs.append(_pack_gates(w_ih, H, Hp).astype(jnp.bfloat16))
                else:
                    # split into fwd-input / bwd-input rows, pad each to Hp rows
                    wf = _pack_gates(jnp.pad(w_ih[:H], ((0, Hp - H), (0, 0))), H, Hp)
                    wb = _pack_gates(jnp.pad(w_ih[H:], ((0, Hp - H), (0, 0))), H, Hp)
                    wih_f_dirs.append(wf.astype(jnp.bfloat16))
                    wih_b_dirs.append(wb.astype(jnp.bfloat16))
            if layer == 0:
                w_ih_pack = (jnp.stack(wih_dirs),)                         # (2, in_dim, 4*Hp)
            else:
                w_ih_pack = (jnp.stack(wih_f_dirs), jnp.stack(wih_b_dirs))  # 2 x (2, Hp, 4*Hp)
            self.params.append((w_ih_pack, jnp.stack(whh_dirs), jnp.stack(b_dirs)))
            self.raw_params.append(tuple(raw_dirs))

    def __call__(self, texts):
        """texts (T, B, input_dim) f32 -> (hs_fwd, hs_bwd), each (T, B, Hp) bf16.
        Padded hidden lanes [H:Hp] are exactly zero, so downstream consumers only need
        their weight rows zero-padded (no :H slicing / concat between kernels)."""
        T, B, D = texts.shape
        Hp = self.Hp
        Tc = _choose_time_chunk(T, B, Hp)
        T_pad = _round_up(T, Tc)
        if T_pad != T:
            texts = jnp.pad(texts, ((0, T_pad - T), (0, 0), (0, 0)))
        hs_f = hs_b = None
        for layer, (w_ih_pack, w_hh, b) in enumerate(self.params):
            if layer == 0:
                x_flat = texts.reshape(T_pad * B, D).astype(jnp.bfloat16)
                xp = _batched_linear_pallas(x_flat, w_ih_pack[0], b,
                                            out_dtype=jnp.bfloat16)        # (2, T_pad*B, 4*Hp)
            else:
                xa = hs_f.reshape(T_pad * B, Hp)
                xb = hs_b.reshape(T_pad * B, Hp)
                xp = _dual_linear_pallas(xa, xb, w_ih_pack[0], w_ih_pack[1], b,
                                         out_dtype=jnp.bfloat16)
            xp = xp.reshape(2, T_pad, B, 4 * Hp)
            if T_pad != T:
                # Padded timesteps: force the input-gate pre-activation to -1e9 so both
                # directions keep h = c = 0 through the padded tail (backward direction
                # visits the tail first) without any per-step masking in the kernel.
                xp = xp.at[:, T:, :, :Hp].set(jnp.asarray(-1e9, xp.dtype))
            hs_f, hs_b = _bilstm_recurrence_pallas(xp, w_hh, Tc=Tc)         # (T_pad, B, Hp) bf16
        return hs_f[:T], hs_b[:T]

    forward = __call__


# ----------------------------------------------------------------------------
# Text_Only_DS wrapper (mirrors the PyTorch module's forward).
# ----------------------------------------------------------------------------
class Text_Only_DS:
    def __init__(self, text_model, ihm_classes=2, decomp_classes=2, los_classes=3,
                 pheno_classes=25, readmit_classes=2, key=None):
        self.text_model = text_model
        self.decomp_classes = decomp_classes
        self.readmit_classes = readmit_classes
        self.los_classes = los_classes
        self.ihm_classes = ihm_classes
        self.pheno_classes = pheno_classes
        if text_model.name == 'cnn':
            textout_dim = text_model.out_channels * 3
        elif text_model.name == 'avg':
            textout_dim = 200
        else:
            textout_dim = text_model.hidden_size * 2
        self.out_dim = textout_dim
        if key is None:
            key = jax.random.PRNGKey(1)
        k_w, k_b = jax.random.split(key)
        stdv = 1.0 / math.sqrt(textout_dim)
        # fc_readmit = Dropout(0.3) -> Linear(out_dim, readmit_classes)
        w = jax.random.uniform(k_w, (textout_dim, readmit_classes), jnp.float32, -stdv, stdv)
        b = jax.random.uniform(k_b, (readmit_classes,), jnp.float32, -stdv, stdv)
        self.w_readmit_raw, self.b_readmit_raw = w, b
        Np = 128                                           # lane-dense padded output classes
        self.n_pad = Np
        self.b_readmit_pad = jnp.pad(b, (0, Np - readmit_classes)).reshape(1, 1, Np)
        if text_model.name == 'lstm':
            H, Hp = text_model.hidden_size, text_model.Hp
            wf = jnp.pad(w[:H], ((0, Hp - H), (0, Np - readmit_classes)))
            wb = jnp.pad(w[H:], ((0, Hp - H), (0, Np - readmit_classes)))
            self.wa_readmit = wf[None].astype(jnp.bfloat16)   # (1, Hp, 128)
            self.wb_readmit = wb[None].astype(jnp.bfloat16)   # (1, Hp, 128)
        else:
            self.w_readmit_pad = jnp.pad(
                w, ((0, 0), (0, Np - readmit_classes)))[None].astype(jnp.bfloat16)
        # TODO(synk): fc_decomp / fc_los / fc_ihm / fc_pheno heads exist in the PyTorch
        # module but are never used by forward(); omitted here.

    def forward(self, texts):
        # TODO(synk): Dropout(0.3) is identity in eval mode; not implemented.
        if self.text_model.name == 'avg':
            feats = texts.reshape(-1, texts.shape[-1]).astype(jnp.bfloat16)
            logits = _batched_linear_pallas(feats, self.w_readmit_pad, self.b_readmit_pad,
                                            out_dtype=jnp.float32)[0]
        else:
            hs_f, hs_b = self.text_model(texts)               # (T, B, Hp) bf16, pad lanes = 0
            R = hs_f.shape[0] * hs_f.shape[1]
            logits = _dual_linear_pallas(
                hs_f.reshape(R, -1), hs_b.reshape(R, -1),
                self.wa_readmit, self.wb_readmit, self.b_readmit_pad,
                out_dtype=jnp.float32)[0]                     # (T*B, 128)
        return logits[:, :self.readmit_classes]               # (T*B, readmit_classes)

    __call__ = forward


# ----------------------------------------------------------------------------
# Pure-JAX reference (lax.scan) with the same bf16/f32 dtype decisions as the kernels.
# ----------------------------------------------------------------------------
def _lstm_dir_ref(x, w_ih, w_hh, b, reverse):
    T, B, _ = x.shape
    H = w_hh.shape[0]
    proj = jnp.dot(x.reshape(T * B, -1).astype(jnp.bfloat16), w_ih.astype(jnp.bfloat16),
                   preferred_element_type=jnp.float32).reshape(T, B, 4 * H) + b
    proj = proj.astype(jnp.bfloat16).astype(jnp.float32)   # kernel stores x_proj in bf16
    if reverse:
        proj = proj[::-1]

    def step(carry, p_t):
        h, c = carry
        gates = p_t + jnp.dot(h.astype(jnp.bfloat16), w_hh.astype(jnp.bfloat16),
                              preferred_element_type=jnp.float32)
        i = jax.nn.sigmoid(gates[:, 0 * H:1 * H])
        f = jax.nn.sigmoid(gates[:, 1 * H:2 * H])
        g = jnp.tanh(gates[:, 2 * H:3 * H])
        o = jax.nn.sigmoid(gates[:, 3 * H:4 * H])
        c = f * c + i * g
        h = o * jnp.tanh(c)
        return (h, c), h

    init = (jnp.zeros((B, H), jnp.float32), jnp.zeros((B, H), jnp.float32))
    _, ys = lax.scan(step, init, proj)
    if reverse:
        ys = ys[::-1]
    return ys


def _forward_ref(model, texts):
    h = texts
    for (fwd_p, bwd_p) in model.text_model.raw_params:
        fwd = _lstm_dir_ref(h, *fwd_p, reverse=False).astype(jnp.bfloat16)   # kernel stores h bf16
        bwd = _lstm_dir_ref(h, *bwd_p, reverse=True).astype(jnp.bfloat16)
        h = jnp.concatenate([fwd, bwd], axis=-1).astype(jnp.float32)
    feats = h.reshape(-1, h.shape[-1]).astype(jnp.bfloat16)
    return (jnp.dot(feats, model.w_readmit_raw.astype(jnp.bfloat16),
                    preferred_element_type=jnp.float32)
            + model.b_readmit_raw)


if __name__ == "__main__":
    # Small shapes: seq=16, batch=2, text embedding dim=16, hidden=32, 1 bi-LSTM layer.
    T, B, D, H = 16, 2, 16, 32

    key = jax.random.PRNGKey(0)
    k_x, k_text, k_head = jax.random.split(key, 3)
    texts = jax.random.normal(k_x, (T, B, D), dtype=jnp.float32)

    text_model = BiLSTMTextModel(input_dim=D, hidden_size=H, num_layers=1, key=k_text)
    model = Text_Only_DS(text_model, readmit_classes=2, key=k_head)

    out = jax.block_until_ready(model(texts))
    ref = jax.block_until_ready(_forward_ref(model, texts))

    assert out.shape == (T * B, 2), out.shape
    err = float(jnp.max(jnp.abs(out - ref)))
    assert err < 1e-2, f"max abs err {err}"
    print("KERNEL_OK")
</pallas_src>

<mosaic_0001>
module attributes {stable_mosaic.version = 11 : i64} {
  func.func @_linear_kernel(%arg0: i32, %arg1: i32, %arg2: memref<32x16xbf16, #tpu.memory_space<vmem>>, %arg3: memref<1x16x512xbf16, #tpu.memory_space<vmem>>, %arg4: memref<1x1x512xf32, #tpu.memory_space<vmem>>, %arg5: memref<1x32x512xbf16, #tpu.memory_space<vmem>>) attributes {dimension_semantics = [#tpu.dimension_semantics<parallel>, #tpu.dimension_semantics<parallel>], iteration_bounds = array<i64: 2, 1>, scalar_prefetch = 0 : i64, scratch_operands = 0 : i64, tpu.core_type = #tpu.core_type<tc>, window_params = [{transform_indices = @transform_0, window_bounds = array<i64: 32, 16>}, {transform_indices = @transform_1, window_bounds = array<i64: 1, 16, 512>}, {transform_indices = @transform_2, window_bounds = array<i64: 1, 1, 512>}, {transform_indices = @transform_3, window_bounds = array<i64: 1, 32, 512>}]} {
    %c0 = arith.constant 0 : index
    %c0_0 = arith.constant 0 : index
    %0 = vector.load %arg2[%c0, %c0_0] : memref<32x16xbf16, #tpu.memory_space<vmem>>, vector<32x16xbf16>
    %c0_1 = arith.constant 0 : index
    %c0_2 = arith.constant 0 : index
    %c0_3 = arith.constant 0 : index
    %1 = vector.load %arg3[%c0_1, %c0_2, %c0_3] : memref<1x16x512xbf16, #tpu.memory_space<vmem>>, vector<1x16x512xbf16>
    %2 = vector.shape_cast %1 : vector<1x16x512xbf16> to vector<16x512xbf16>
    %cst = arith.constant dense<0.000000e+00> : vector<32x512xf32>
    %3 = tpu.matmul %0, %2, %cst {dimension_numbers = #tpu.dot_dimension_numbers<[1], [0], [0], [1], [0, 0, 1, 1], [], []>} : vector<32x16xbf16>, vector<16x512xbf16>, vector<32x512xf32> -> vector<32x512xf32>
    %c0_4 = arith.constant 0 : index
    %c0_5 = arith.constant 0 : index
    %c0_6 = arith.constant 0 : index
    %4 = vector.load %arg4[%c0_4, %c0_5, %c0_6] : memref<1x1x512xf32, #tpu.memory_space<vmem>>, vector<1x1x512xf32>
    %5 = vector.shape_cast %4 : vector<1x1x512xf32> to vector<1x512xf32>
    %6 = vector.broadcast %5 : vector<1x512xf32> to vector<32x512xf32>
    %7 = arith.addf %3, %6 : vector<32x512xf32>
    %8 = arith.truncf %7 : vector<32x512xf32> to vector<32x512xbf16>
    %c0_7 = arith.constant 0 : index
    %c0_8 = arith.constant 0 : index
    %c0_9 = arith.constant 0 : index
    %9 = vector.load %arg5[%c0_7, %c0_8, %c0_9] : memref<1x32x512xbf16, #tpu.memory_space<vmem>>, vector<1x32x512xbf16>
    %10 = vector.shape_cast %9 : vector<1x32x512xbf16> to vector<32x512xbf16>
    %11 = vector.shape_cast %8 : vector<32x512xbf16> to vector<1x32x512xbf16>
    tpu.vector_store %arg5[%c0_7, %c0_8, %c0_9], %11 {strides = array<i32>} : memref<1x32x512xbf16, #tpu.memory_space<vmem>>, vector<1x32x512xbf16>,
    return
  }
  func.func @transform_0(%arg0: i32, %arg1: i32) -> (i32, i32) {
    %c0_i32 = arith.constant 0 : i32
    %c0_i32_0 = arith.constant 0 : i32
    return %arg1, %c0_i32 : i32, i32
  }
  func.func @transform_1(%arg0: i32, %arg1: i32) -> (i32, i32, i32) {
    %c0_i32 = arith.constant 0 : i32
    %c0_i32_0 = arith.constant 0 : i32
    %c0_i32_1 = arith.constant 0 : i32
    return %arg0, %c0_i32, %c0_i32_0 : i32, i32, i32
  }
  func.func @transform_2(%arg0: i32, %arg1: i32) -> (i32, i32, i32) {
    %c0_i32 = arith.constant 0 : i32
    %c0_i32_0 = arith.constant 0 : i32
    %c0_i32_1 = arith.constant 0 : i32
    return %arg0, %c0_i32, %c0_i32_0 : i32, i32, i32
  }
  func.func @transform_3(%arg0: i32, %arg1: i32) -> (i32, i32, i32) {
    %c0_i32 = arith.constant 0 : i32
    %c0_i32_0 = arith.constant 0 : i32
    return %arg0, %arg1, %c0_i32 : i32, i32, i32
  }
}

</mosaic_0001>

<llo_original>
// kernel: tpu_custom_call.1
$region0: #{tpu_custom_call.1}
  #allocation0 [shape = 'u32[]', space=smem, size = 0x4, offset = 0x4, fixed_abs, tag = 'smem constant byte address 0x4 - core index']
  #allocation1 [shape = 'u32[144,128]{1,0:T(1,128)}', space=vmem, size = 0x12000, scoped, tag = 'internal scratch']
  %s0 = inlined_call_operand.vmem [shape: bf16[32,16], index: 0, kind: input, shape index: {}]
  %s1 = inlined_call_operand.hbm [shape: bf16[2,16,512], index: 1, kind: input, shape index: {}]
  %s2 = inlined_call_operand.vmem [shape: f32[2,1,512], index: 2, kind: input, shape index: {}]
  %s3 = inlined_call_operand.hbm [shape: bf16[2,32,512], index: 3, kind: output, shape index: {}]
  %s4 = sld [smem:[#allocation0]]
  $region49: #{tpu_custom_call.1} parent=0
    _
  %s6 = ssub.s32 1, %s4
  %s7 = scalar_select 0, %s6, %s4
  $region1: #{tpu_custom_call.1} parent=0
    #allocation2 [shape = 'u8[32768]{0}', space=vmem, size = 0x8000, scoped, tag = 'input window, operand 1']
    #allocation3 [shape = 's32[2]{0}', space=sflag, size = 0x8, scoped, tag = 'scoped memory for tpu_custom_call.1']
    #allocation4 [shape = 's32[2]{0}', space=sflag, size = 0x8, scoped, tag = 'scoped memory for tpu_custom_call.1']
    #allocation5 [shape = 'u8[65536]{0}', space=vmem, size = 0x10000, scoped, tag = 'output window, operand 0']
    %8 = vsyncpa [#allocation3], 0
    %s9 = scalar_lea.sflag [#allocation3], 1
    %10 = vsyncpa %s9, 0
    %11 = vsyncpa [#allocation4], 0
    %s12 = scalar_lea.sflag [#allocation4], 1
    %13 = vsyncpa %s12, 0
    loop: start=0, step=1, limit=4
    $region2: #{tpu_custom_call.1} parent=1 // loop_pre_header
      _
    $region3: #{tpu_custom_call.1} parent=1 // loop_header
      %s15 = sphi 0, %s19
      %p16 = scmp.ge.s32.totalorder %s15, 4
      %s22 = sphi 0, %s34
      %s23 = sphi 0, %s30
      %s24 = sphi 0, %s22
      %s25 = sphi 0, %s23
      %s26 = sphi 0, %s24
      %s27 = sphi 0, %s25
      %s37 = sphi 0, %s39
      %s40 = sphi 0, %s37
      %s41 = sphi 0, %s40
      %s57 = sphi 0, %s41
      %s63 = sphi 0, %s65
      %s66 = sphi 0, %s63
      %s67 = sphi 0, %s66
      %s83 = sphi 0, %s67
      %s89 = sphi 0, %s91
      %s92 = sphi 0, %s89
      %s93 = sphi 0, %s92
      %s109 = sphi 0, %s93
      %s117 = sphi 0, %s119
      %s120 = sphi 0, %s117
      %s121 = sphi 0, %s120
      %s137 = sphi 0, %s121
    $region4: #{tpu_custom_call.1} parent=1 // loop_header_branch
      %18 = sbr.rel (%p16) target = $region8
    $region5: #{tpu_custom_call.1} parent=1 // loop_body
      %s20 = ssub.s32 %s15, 1
      %s21 = ssub.s32 %s15, 2
      %s28 = sadd.s32 1, %s23
      %p29 = scmp.ge.s32.totalorder %s28, 1
      %s30 = scalar_select %p29, 0, %s28
      %s31 = sadd.s32 1, %s22
      %s32 = scalar_select %p29, %s31, %s22
      %p33 = scmp.ge.s32.totalorder %s32, 2
      %s34 = scalar_select %p33, 0, %s32
      %s35 = ssub.s32 %s23, %s30
      %p36 = scmp.eq.s32.totalorder %s35, 0
      %s38 = sadd.s32 %s37, 1
      %s39 = scalar_select %p36, %s37, %s38
      %p42 = pneg %p36
      %p43 = scmp.eq.s32.totalorder %s15, 1
      %p44 = por %p42, %p43
      %p45 = scmp.ne.s32.totalorder %s37, %s40
      %p46 = scmp.eq.s32.totalorder %s15, 0
      %p47 = por %p45, %p46
      %p48 = scmp.ne.s32.totalorder %s37, %s40
      %p49 = scmp.eq.s32.totalorder %s20, 1
      %p50 = por %p48, %p49
      %p51 = scmp.ne.s32.totalorder %s40, %s41
      %p52 = scmp.eq.s32.totalorder %s20, 0
      %p53 = por %p51, %p52
      %p54 = scmp.ne.s32.totalorder %s40, %s41
      %p55 = scmp.eq.s32.totalorder %s21, 1
      %p56 = por %p54, %p55
      %p58 = scmp.ne.s32.totalorder %s41, %s57
      %p59 = scmp.eq.s32.totalorder %s21, 0
      %p60 = por %p58, %p59
      %s61 = ssub.s32 %s22, %s34
      %p62 = scmp.eq.s32.totalorder %s61, 0
      %s64 = sadd.s32 %s63, 1
      %s65 = scalar_select %p62, %s63, %s64
      %p68 = pneg %p62
      %p69 = scmp.eq.s32.totalorder %s15, 1
      %p70 = por %p68, %p69
      %p71 = scmp.ne.s32.totalorder %s63, %s66
      %p72 = scmp.eq.s32.totalorder %s15, 0
      %p73 = por %p71, %p72
      %p74 = scmp.ne.s32.totalorder %s63, %s66
      %p75 = scmp.eq.s32.totalorder %s20, 1
      %p76 = por %p74, %p75
      %p77 = scmp.ne.s32.totalorder %s66, %s67
      %p78 = scmp.eq.s32.totalorder %s20, 0
      %p79 = por %p77, %p78
      %p80 = scmp.ne.s32.totalorder %s66, %s67
      %p81 = scmp.eq.s32.totalorder %s21, 1
      %p82 = por %p80, %p81
      %p84 = scmp.ne.s32.totalorder %s67, %s83
      %p85 = scmp.eq.s32.totalorder %s21, 0
      %p86 = por %p84, %p85
      %s87 = ssub.s32 %s22, %s34
      %p88 = scmp.eq.s32.totalorder %s87, 0
      %s90 = sadd.s32 %s89, 1
      %s91 = scalar_select %p88, %s89, %s90
      %p94 = pneg %p88
      %p95 = scmp.eq.s32.totalorder %s15, 1
      %p96 = por %p94, %p95
      %p97 = scmp.ne.s32.totalorder %s89, %s92
      %p98 = scmp.eq.s32.totalorder %s15, 0
      %p99 = por %p97, %p98
      %p100 = scmp.ne.s32.totalorder %s89, %s92
      %p101 = scmp.eq.s32.totalorder %s20, 1
      %p102 = por %p100, %p101
      %p103 = scmp.ne.s32.totalorder %s92, %s93
      %p104 = scmp.eq.s32.totalorder %s20, 0
      %p105 = por %p103, %p104
      %p106 = scmp.ne.s32.totalorder %s92, %s93
      %p107 = scmp.eq.s32.totalorder %s21, 1
      %p108 = por %p106, %p107
      %p110 = scmp.ne.s32.totalorder %s93, %s109
      %p111 = scmp.eq.s32.totalorder %s21, 0
      %p112 = por %p110, %p111
      %s113 = ssub.s32 %s22, %s34
      %s114 = ssub.s32 %s23, %s30
      %s115 = sor.u32 %s113, %s114
      %p116 = scmp.eq.s32.totalorder %s115, 0
      %s118 = sadd.s32 %s117, 1
      %s119 = scalar_select %p116, %s117, %s118
      %p122 = pneg %p116
      %p123 = scmp.eq.s32.totalorder %s15, 1
      %p124 = por %p122, %p123
      %p125 = scmp.ne.s32.totalorder %s117, %s120
      %p126 = scmp.eq.s32.totalorder %s15, 0
      %p127 = por %p125, %p126
      %p128 = scmp.ne.s32.totalorder %s117, %s120
      %p129 = scmp.eq.s32.totalorder %s20, 1
      %p130 = por %p128, %p129
      %p131 = scmp.ne.s32.totalorder %s120, %s121
      %p132 = scmp.eq.s32.totalorder %s20, 0
      %p133 = por %p131, %p132
      %p134 = scmp.ne.s32.totalorder %s120, %s121
      %p135 = scmp.eq.s32.totalorder %s21, 1
      %p136 = por %p134, %p135
      %p138 = scmp.ne.s32.totalorder %s121, %s137
      %p139 = scmp.eq.s32.totalorder %s21, 0
      %p140 = por %p138, %p139
      %p141 = scmp.le.s32.totalorder 1, %s15
      %p142 = scmp.lt.s32.totalorder %s15, 3
      %p143 = pnand %p141, %p142
      %p144 = pneg %p143
      // Predicated region
      $region9: #{tpu_custom_call.1} parent=5 // pred_check
        _
      $region10: #{tpu_custom_call.1} parent=5 // pred_check_branch
        %146 = sbr.rel (%p143) target = $region12
      $region11: #{tpu_custom_call.1} parent=5 // pred_region
        %s147 = ssub.s32 %s15, 1
        // Predicated region
        $region13: #{tpu_custom_call.1} parent=11 // pred_check
          %p148 = pneg %p53
        $region14: #{tpu_custom_call.1} parent=11 // pred_check_branch
          %150 = sbr.rel (%p148) target = $region16
        $region15: #{tpu_custom_call.1} parent=11 // pred_region
          %s151 = smul.u32 4, %s25
          %p152 = scmp.lt.s32.totalorder %s151, 3
          %s153 = scalar_select %p152, %s151, 3
          %s154 = smul.addr %s153, 4
          %s155 = scalar_lea.vmem %s0, %s154
          %s156 = smul.u32 4, %s25
        $region16: #{tpu_custom_call.1} parent=11 // pred_fallthru
          _
      $region12: #{tpu_custom_call.1} parent=5 // pred_fallthru
        _
      %p157 = scmp.lt.s32.totalorder %s15, 2
      // Predicated region
      $region17: #{tpu_custom_call.1} parent=5 // pred_check
        %p158 = pneg %p157
      $region18: #{tpu_custom_call.1} parent=5 // pred_check_branch
        %160 = sbr.rel (%p158) target = $region20
      $region19: #{tpu_custom_call.1} parent=5 // pred_region
        // Predicated region
        $region21: #{tpu_custom_call.1} parent=19 // pred_check
          %p161 = pneg %p73
        $region22: #{tpu_custom_call.1} parent=19 // pred_check_branch
          %163 = sbr.rel (%p161) target = $region24
        $region23: #{tpu_custom_call.1} parent=19 // pred_region
          %s164 = sand.u32 %s63, 1
          %s165 = scalar_lea.sflag [#allocation3], %s164
          %s166 = sand.u32 %s63, 1
          %s167 = smul.addr %s166, 32
          %s168 = scalar_lea.vmem [#allocation2], %s167
          %s170 = ssub.s32 512, 512
          %171 = vsyncadd %s165, %s170
          %s172 = smul.addr %s22, 8
          %s173 = smul.addr %s172, 64
          %s174 = scalar_lea.hbm %s1, %s173
          %s175 = sshll.u32 %s168, 4
          %s176 = int_to_ptr.vmem [resolvable:$true] %s175
          %181 = dma.hbm_to_vmem [thread:$0]  %s174, 512, %s176, %s165, 256, 256, 16
        $region24: #{tpu_custom_call.1} parent=19 // pred_fallthru
          _
        // Predicated region
        $region25: #{tpu_custom_call.1} parent=19 // pred_check
          %p182 = pneg %p99
        $region26: #{tpu_custom_call.1} parent=19 // pred_check_branch
          %184 = sbr.rel (%p182) target = $region28
        $region27: #{tpu_custom_call.1} parent=19 // pred_region
          %p185 = scmp.lt.s32.totalorder %s22, 1
          %s186 = scalar_select %p185, %s22, 1
          %s187 = smul.addr %s186, 4
          %s188 = scalar_lea.vmem %s2, %s187
        $region28: #{tpu_custom_call.1} parent=19 // pred_fallthru
          _
      $region20: #{tpu_custom_call.1} parent=5 // pred_fallthru
        _
      %p189 = scmp.le.s32.totalorder 1, %s15
      %p190 = scmp.lt.s32.totalorder %s15, 3
      %p191 = pnand %p189, %p190
      %p192 = pneg %p191
      // Predicated region
      $region29: #{tpu_custom_call.1} parent=5 // pred_check
        _
      $region30: #{tpu_custom_call.1} parent=5 // pred_check_branch
        %194 = sbr.rel (%p191) target = $region32
      $region31: #{tpu_custom_call.1} parent=5 // pred_region
        %s195 = ssub.s32 %s15, 1
        %s196 = sand.u32 %s66, 1
        %s197 = scalar_lea.sflag [#allocation3], %s196
        %s198 = sand.u32 %s66, 1
        %s199 = smul.addr %s198, 32
        %s200 = scalar_lea.vmem [#allocation2], %s199
        // Predicated region
        $region33: #{tpu_custom_call.1} parent=31 // pred_check
          %p201 = pneg %p79
        $region34: #{tpu_custom_call.1} parent=31 // pred_check_branch
          %203 = sbr.rel (%p201) target = $region36
        $region35: #{tpu_custom_call.1} parent=31 // pred_region
          %204 = dma.done %s197, 512
        $region36: #{tpu_custom_call.1} parent=31 // pred_fallthru
          _
        %s205 = smul.u32 4, %s25
        %p206 = scmp.lt.s32.totalorder %s205, 3
        %s207 = scalar_select %p206, %s205, 3
        %s208 = smul.addr %s207, 4
        %s209 = scalar_lea.vmem %s0, %s208
        %p210 = pneg %p53
        %p211 = pneg %p50
        %s212 = sand.u32 %s66, 1
        %s213 = scalar_lea.sflag [#allocation3], %s212
        %s214 = sand.u32 %s66, 1
        %s215 = smul.addr %s214, 32
        %s216 = scalar_lea.vmem [#allocation2], %s215
        %p217 = pneg %p79
        %p218 = pneg %p76
        %p219 = scmp.lt.s32.totalorder %s24, 1
        %s220 = scalar_select %p219, %s24, 1
        %s221 = smul.addr %s220, 4
        %s222 = scalar_lea.vmem %s2, %s221
        %p223 = pneg %p105
        %p224 = pneg %p102
        %p225 = pneg %p133
        %p226 = pneg %p130
        %s227 = sand.u32 %s120, 1
        %s228 = scalar_lea.sflag [#allocation4], %s227
        %s229 = sand.u32 %s120, 1
        %s230 = smul.addr %s229, 64
        %s231 = scalar_lea.vmem [#allocation5], %s230
        %s232 = smul.u32 4, %s25
        %p233 = scmp.lt.s32.totalorder %s232, 3
        %s234 = scalar_select %p233, %s232, 3
        %s235 = smul.addr %s234, 4
        %s236 = scalar_lea.vmem %s0, %s235
        %s237 = smul.u32 4, %s25
        %p238 = scmp.lt.s32.totalorder %s24, 1
        %s239 = scalar_select %p238, %s24, 1
        %s240 = smul.addr %s239, 4
        %s241 = scalar_lea.vmem %s2, %s240
        %s242 = smul.u32 4, %s25
        %v244 = vld [vmem:[%s236] sm:$0xf]
        %v245 = vld [vmem:[%s236 + $0x4] sm:$0xf]
        %v246 = vld [vmem:[%s236 + $0x8] sm:$0xf]
        %v247 = vld [vmem:[%s236 + $0xc] sm:$0xf]
        %v248 = vld [vmem:[%s200] sm:$0xff]
        %v249 = vld [vmem:[%s200 + $0x8] sm:$0xff]
        %v250 = vld [vmem:[%s200 + $0x10] sm:$0xff]
        %v251 = vld [vmem:[%s200 + $0x18] sm:$0xff]
        %v252 = vld [vmem:[%s241] sm:$0xf]
        %v254 = vlaneseq
        %v255 = vshrl.u32 %v254, 7
        %v256 = vsub.s32 0, %v255
        %v257 = vrot.slane %v252, %v256
        %v258 = vlaneseq
        %v259 = vshrl.u32 %v258, 7
        %v260 = vsub.s32 1, %v259
        %v261 = vrot.slane %v252, %v260
        %v262 = vlaneseq
        %v263 = vshrl.u32 %v262, 7
        %v264 = vsub.s32 2, %v263
        %v265 = vrot.slane %v252, %v264
        %v266 = vlaneseq
        %v267 = vshrl.u32 %v266, 7
        %v268 = vsub.s32 3, %v267
        %v269 = vrot.slane %v252, %v268
        %v278 = vunpack.c.l.b16 %v244
        %v279 = vunpack.c.l.b16 %v245
        %v280 = vunpack.c.l.b16 %v246
        %v281 = vunpack.c.l.b16 %v247
        %v282 = vpack.c.b16 %v279, %v278
        %v283 = vpack.c.b16 %v281, %v280
        %v288 = vunpack.c.l.b16 %v248
        %v289 = vunpack.c.h.b16 %v248
        %v290 = vunpack.c.l.b16 %v249
        %v291 = vunpack.c.h.b16 %v249
        %v292 = vunpack.c.l.b16 %v250
        %v293 = vunpack.c.h.b16 %v250
        %v294 = vunpack.c.l.b16 %v251
        %v295 = vunpack.c.h.b16 %v251
        %v296 = vpack.c.b16 %v292, %v288
        %v297 = vpack.c.b16 %v293, %v289
        %v298 = vpack.c.b16 %v294, %v290
        %v299 = vpack.c.b16 %v295, %v291
        %vm304 = vcmask 130048
        %v306 = vsel %vm304, %v282, 0
        %v309 = vsel %vm304, %v283, 0
        %311 = vmatprep.subr.bf16.mxu0 %v297
        %312 = vmatpush1.bf16.msra.mxu0 %v296
        %313 = vmatprep.subr.bf16.mxu0 0
        %314 = vmatpush1.bf16.msra.mxu0 0
        %315 = vmatprep.subr.bf16.mxu0 0
        %316 = vmatpush1.bf16.msra.mxu0 0
        %317 = vmatprep.subr.bf16.mxu0 0
        %318 = vmatpush1.bf16.msra.mxu0 0
        %319 = vmatprep.subr.bf16.mxu0 0
        %320 = vmatpush1.bf16.msra.mxu0 0
        %321 = vmatprep.subr.bf16.mxu0 0
        %322 = vmatpush1.bf16.msra.mxu0 0
        %323 = vmatprep.subr.bf16.mxu0 0
        %324 = vmatpush1.bf16.msra.mxu0 0
        %325 = vmatprep.subr.bf16.mxu0 0
        %326 = vmatpush1.bf16.msra.mxu0 0
        %327 = vmatprep.subr.bf16.mxu0 0
        %328 = vmatpush1.bf16.msra.mxu0 0
        %329 = vmatprep.subr.bf16.mxu0 0
        %330 = vmatpush1.bf16.msra.mxu0 0
        %331 = vmatprep.subr.bf16.mxu0 0
        %332 = vmatpush1.bf16.msra.mxu0 0
        %333 = vmatprep.subr.bf16.mxu0 0
        %334 = vmatpush1.bf16.msra.mxu0 0
        %335 = vmatprep.subr.bf16.mxu0 0
        %336 = vmatpush1.bf16.msra.mxu0 0
        %337 = vmatprep.subr.bf16.mxu0 0
        %338 = vmatpush1.bf16.msra.mxu0 0
        %339 = vmatprep.subr.bf16.mxu0 0
        %340 = vmatpush1.bf16.msra.mxu0 0
        %341 = vmatprep.subr.bf16.mxu0 0
        %342 = vmatpush1.bf16.msra.mxu0 0
        %343 = vmatprep.mubr.bf16.mxu0 0
        %344 = vmatmul.mubr.bf16.gmra.mrb[0].mxu0 %v306
        %v345 = vpop.f32.mrb[0].mxu0
        %v346 = vadd.f32 %v257, %v345
        %v347 = vpop.f32.mrb[0].mxu0
        %v348 = vadd.f32 %v261, %v347
        %v349 = vpop.f32.mrb[0].mxu0
        %v350 = vadd.f32 %v257, %v349
        %v351 = vpop.f32.mrb[0].mxu0
        %v352 = vadd.f32 %v261, %v351
        %353 = vmatprep.mubr.bf16.mxu0 0
        %354 = vmatmul.mubr.bf16.gmra.mrb[0].mxu0 %v309
        %v355 = vpop.f32.mrb[0].mxu0
        %v356 = vadd.f32 %v257, %v355
        %v357 = vpop.f32.mrb[0].mxu0
        %v358 = vadd.f32 %v261, %v357
        %v359 = vpop.f32.mrb[0].mxu0
        %v360 = vadd.f32 %v257, %v359
        %v361 = vpop.f32.mrb[0].mxu0
        %v362 = vadd.f32 %v261, %v361
        %363 = vdwg.mxu0
        %364 = vmatprep.subr.bf16.mxu0 %v299
        %365 = vmatpush1.bf16.msra.mxu0 %v298
        %366 = vmatprep.subr.bf16.mxu0 0
        %367 = vmatpush1.bf16.msra.mxu0 0
        %368 = vmatprep.subr.bf16.mxu0 0
        %369 = vmatpush1.bf16.msra.mxu0 0
        %370 = vmatprep.subr.bf16.mxu0 0
        %371 = vmatpush1.bf16.msra.mxu0 0
        %372 = vmatprep.subr.bf16.mxu0 0
        %373 = vmatpush1.bf16.msra.mxu0 0
        %374 = vmatprep.subr.bf16.mxu0 0
        %375 = vmatpush1.bf16.msra.mxu0 0
        %376 = vmatprep.subr.bf16.mxu0 0
        %377 = vmatpush1.bf16.msra.mxu0 0
        %378 = vmatprep.subr.bf16.mxu0 0
        %379 = vmatpush1.bf16.msra.mxu0 0
        %380 = vmatprep.subr.bf16.mxu0 0
        %381 = vmatpush1.bf16.msra.mxu0 0
        %382 = vmatprep.subr.bf16.mxu0 0
        %383 = vmatpush1.bf16.msra.mxu0 0
        %384 = vmatprep.subr.bf16.mxu0 0
        %385 = vmatpush1.bf16.msra.mxu0 0
        %386 = vmatprep.subr.bf16.mxu0 0
        %387 = vmatpush1.bf16.msra.mxu0 0
        %388 = vmatprep.subr.bf16.mxu0 0
        %389 = vmatpush1.bf16.msra.mxu0 0
        %390 = vmatprep.subr.bf16.mxu0 0
        %391 = vmatpush1.bf16.msra.mxu0 0
        %392 = vmatprep.subr.bf16.mxu0 0
        %393 = vmatpush1.bf16.msra.mxu0 0
        %394 = vmatprep.subr.bf16.mxu0 0
        %395 = vmatpush1.bf16.msra.mxu0 0
        %396 = vmatprep.mubr.bf16.mxu0 0
        %397 = vmatmul.mubr.bf16.gmra.mrb[0].mxu0 %v306
        %v398 = vpop.f32.mrb[0].mxu0
        %v399 = vadd.f32 %v265, %v398
        %v400 = vpop.f32.mrb[0].mxu0
        %v401 = vadd.f32 %v269, %v400
        %v402 = vpop.f32.mrb[0].mxu0
        %v403 = vadd.f32 %v265, %v402
        %v404 = vpop.f32.mrb[0].mxu0
        %v405 = vadd.f32 %v269, %v404
        %406 = vmatprep.mubr.bf16.mxu0 0
        %407 = vmatmul.mubr.bf16.gmra.mrb[0].mxu0 %v309
        %v408 = vpop.f32.mrb[0].mxu0
        %v409 = vadd.f32 %v265, %v408
        %v410 = vpop.f32.mrb[0].mxu0
        %v411 = vadd.f32 %v269, %v410
        %v412 = vpop.f32.mrb[0].mxu0
        %v413 = vadd.f32 %v265, %v412
        %v414 = vpop.f32.mrb[0].mxu0
        %v415 = vadd.f32 %v269, %v414
        %416 = vdwg.mxu0
        %v417 = vpack.c.bf16 %v350, %v346
        %v418 = vpack.c.bf16 %v352, %v348
        %v419 = vpack.c.bf16 %v403, %v399
        %v420 = vpack.c.bf16 %v405, %v401
        %v421 = vpack.c.bf16 %v360, %v356
        %v422 = vpack.c.bf16 %v362, %v358
        %v423 = vpack.c.bf16 %v413, %v409
        %v424 = vpack.c.bf16 %v415, %v411
        %v433 = vunpack.c.l.b16 %v417
        %v434 = vunpack.c.l.b16 %v418
        %v435 = vunpack.c.l.b16 %v419
        %v436 = vunpack.c.l.b16 %v420
        %v437 = vunpack.c.h.b16 %v417
        %v438 = vunpack.c.h.b16 %v418
        %v439 = vunpack.c.h.b16 %v419
        %v440 = vunpack.c.h.b16 %v420
        %v441 = vunpack.c.l.b16 %v421
        %v442 = vunpack.c.l.b16 %v422
        %v443 = vunpack.c.l.b16 %v423
        %v444 = vunpack.c.l.b16 %v424
        %v445 = vunpack.c.h.b16 %v421
        %v446 = vunpack.c.h.b16 %v422
        %v447 = vunpack.c.h.b16 %v423
        %v448 = vunpack.c.h.b16 %v424
        %v449 = vpack.c.b16 %v434, %v433
        %v450 = vpack.c.b16 %v436, %v435
        %v451 = vpack.c.b16 %v438, %v437
        %v452 = vpack.c.b16 %v440, %v439
        %v453 = vpack.c.b16 %v442, %v441
        %v454 = vpack.c.b16 %v444, %v443
        %v455 = vpack.c.b16 %v446, %v445
        %v456 = vpack.c.b16 %v448, %v447
        %465 = vst [vmem:[%s231] sm:$0xff] %v449
        %466 = vst [vmem:[%s231 + $0x8] sm:$0xff] %v450
        %467 = vst [vmem:[%s231 + $0x10] sm:$0xff] %v451
        %468 = vst [vmem:[%s231 + $0x18] sm:$0xff] %v452
        %469 = vst [vmem:[%s231 + $0x20] sm:$0xff] %v453
        %470 = vst [vmem:[%s231 + $0x28] sm:$0xff] %v454
        %471 = vst [vmem:[%s231 + $0x30] sm:$0xff] %v455
        %472 = vst [vmem:[%s231 + $0x38] sm:$0xff] %v456
        %s473 = sand.u32 %s120, 1
        %s474 = scalar_lea.sflag [#allocation4], %s473
        %s475 = sand.u32 %s120, 1
        %s476 = smul.addr %s475, 64
        %s477 = scalar_lea.vmem [#allocation5], %s476
        // Predicated region
        $region37: #{tpu_custom_call.1} parent=31 // pred_check
          %p478 = pneg %p130
        $region38: #{tpu_custom_call.1} parent=31 // pred_check_branch
          %480 = sbr.rel (%p478) target = $region40
        $region39: #{tpu_custom_call.1} parent=31 // pred_region
          %s481 = smul.u32 4, %s25
          %s483 = ssub.s32 1024, 1024
          %484 = vsyncadd %s474, %s483
          %s485 = smul.addr %s481, 4
          %s486 = smul.addr %s24, 16
          %s487 = sadd.s32 %s485, %s486
          %s488 = smul.addr %s487, 64
          %s489 = scalar_lea.hbm %s3, %s488
          %s490 = sshll.u32 %s477, 4
          %s491 = int_to_ptr.vmem [resolvable:$true] %s490
          %496 = dma.vmem_to_hbm [thread:$0]  %s491, 1024, %s489, %s474, 256, 256, 16
        $region40: #{tpu_custom_call.1} parent=31 // pred_fallthru
          _
      $region32: #{tpu_custom_call.1} parent=5 // pred_fallthru
        _
      %p497 = scmp.le.s32.totalorder 2, %s15
      // Predicated region
      $region41: #{tpu_custom_call.1} parent=5 // pred_check
        %p498 = pneg %p497
      $region42: #{tpu_custom_call.1} parent=5 // pred_check_branch
        %500 = sbr.rel (%p498) target = $region44
      $region43: #{tpu_custom_call.1} parent=5 // pred_region
        %s501 = ssub.s32 %s15, 2
        // Predicated region
        $region45: #{tpu_custom_call.1} parent=43 // pred_check
          %p502 = pneg %p136
        $region46: #{tpu_custom_call.1} parent=43 // pred_check_branch
          %504 = sbr.rel (%p502) target = $region48
        $region47: #{tpu_custom_call.1} parent=43 // pred_region
          %s505 = sand.u32 %s121, 1
          %s506 = scalar_lea.sflag [#allocation4], %s505
          %s507 = sand.u32 %s121, 1
          %s508 = smul.addr %s507, 64
          %s509 = scalar_lea.vmem [#allocation5], %s508
          %510 = dma.done %s506, 1024
        $region48: #{tpu_custom_call.1} parent=43 // pred_fallthru
          _
      $region44: #{tpu_custom_call.1} parent=5 // pred_fallthru
        _
    $region6: #{tpu_custom_call.1} parent=1 // loop_footer
      %s19 = sadd.s32 1, %s15
    $region7: #{tpu_custom_call.1} parent=1 // loop_footer_branch
      %14 = sbr.rel target = $region3
    $region8: #{tpu_custom_call.1} parent=1 // loop_exit
      _
    %511 = vsyncpa [#allocation3], 1
    %s512 = scalar_lea.sflag [#allocation3], 1
    %513 = vsyncpa %s512, 1
    %514 = vsyncpa [#allocation4], 1
    %s515 = scalar_lea.sflag [#allocation4], 1
    %516 = vsyncpa %s515, 1

</llo_original>
